<compile_context>
chip_gen: v7x
topology: tpu7x:2x2x1
jax: 0.10.0
libtpu: 0.0.40
codegen_flags: <defaults>
</compile_context>

<pallas_src>
import math

import jax
import jax.numpy as jnp
from jax.experimental import pallas as pl
from jax.experimental.pallas import tpu as pltpu


def _implicit_mlp_kernel(*refs):
    """refs = (ppre, freq, wf, W1, b1, ..., Wout_pad, bout_pad, out).

    ppre : (1, 1, H0)  per-batch params-contribution + folded bias
    freq : (1, tf, 1)  frequency column for this (batch, freq-tile)
    wf   : (1, H0)     folded first-layer weight row for the frequency token
    """
    ppre_ref, freq_ref, wf_ref = refs[0], refs[1], refs[2]
    o_ref = refs[-1]
    layer_refs = refs[3:-1]
    n_rest = len(layer_refs) // 2          # linears after the folded first one
    total_linears = n_rest + 1             # depth hidden layers + output layer

    f = freq_ref[0]                        # (tf, 1)
    # folded first Linear: feats @ Wfold + bfold
    #   = freq * wf  +  (params @ Wp + bfold)   (second term precomputed = ppre)
    h = f * wf_ref[...] + ppre_ref[0]      # (tf, H0)

    # ReLU after every hidden Linear except the last hidden one.
    if total_linears >= 3:                 # folded layer is a non-last hidden layer
        h = jnp.maximum(h, 0.0)

    for j in range(n_rest):                # original linear index i = j + 1
        w = layer_refs[2 * j][...]
        b = layer_refs[2 * j + 1][...]
        h = jnp.dot(h, w, preferred_element_type=jnp.float32) + b
        if (j + 1) < total_linears - 2:
            h = jnp.maximum(h, 0.0)

    o_ref[0] = h.astype(o_ref.dtype)


def implicit_mlp_pallas(frequency, parameters, weights, *, embed_dim, tile_f=1024):
    B, F = frequency.shape
    params_cat = jnp.concatenate(parameters, axis=1).astype(jnp.float32)   # (B, P-1)
    P = params_cat.shape[1] + 1
    E = embed_dim

    wtok = weights["wtok"]            # (1, P*E)
    btok = weights["btok"]            # (1, P*E)
    linears = weights["linears"]      # [(W (in,out), b (1,out)), ...] incl. output layer
    W0, b0 = linears[0]               # (P*E, H0), (1, H0)
    H0 = W0.shape[1]
    M = linears[-1][0].shape[1]

    # ---- fold GroupwiseProjection + embed_dim repeat into the first Linear ----
    Wfold = (W0.reshape(P, E, H0) * wtok.reshape(P, E, 1)).sum(axis=1)     # (P, H0)
    bfold = btok @ W0 + b0                                                 # (1, H0)
    Wp, wf = Wfold[: P - 1], Wfold[P - 1:]                                 # (P-1,H0), (1,H0)

    # per-batch parameter contribution (tiny XLA matmul; no F-fold replication)
    ppre = (params_cat @ Wp + bfold)[:, None, :]                           # (B, 1, H0)

    # ---- lane-dense output: pad output Linear to a multiple of 128 lanes ----
    Wout, bout = linears[-1]
    LANES = 128
    Mpad = max(LANES, -(-M // LANES) * LANES)
    Wout_p = jnp.pad(Wout, ((0, 0), (0, Mpad - M)))
    bout_p = jnp.pad(bout, ((0, 0), (0, Mpad - M)))
    mids = linears[1:-1]

    # ---- frequency tiling: big row tiles, multiple of 8, 2-D parallel grid ----
    tf = min(tile_f, -(-F // 8) * 8)
    tf = max(8, (tf // 8) * 8)
    F_pad = -(-F // tf) * tf
    freq_col = frequency.astype(jnp.float32).reshape(B, F, 1)
    if F_pad != F:
        freq_col = jnp.pad(freq_col, ((0, 0), (0, F_pad - F), (0, 0)))

    flat_weights = []
    in_specs = [
        pl.BlockSpec((1, 1, H0), lambda b, f: (b, 0, 0)),   # ppre (per batch)
        pl.BlockSpec((1, tf, 1), lambda b, f: (b, f, 0)),   # frequency tile
        pl.BlockSpec((1, H0), lambda b, f: (0, 0)),         # wf
    ]
    for (w, bias) in mids:
        flat_weights += [w, bias]
        in_specs += [pl.BlockSpec(w.shape, lambda b, f: (0, 0)),
                     pl.BlockSpec(bias.shape, lambda b, f: (0, 0))]
    flat_weights += [Wout_p, bout_p]
    in_specs += [pl.BlockSpec(Wout_p.shape, lambda b, f: (0, 0)),
                 pl.BlockSpec(bout_p.shape, lambda b, f: (0, 0))]

    out = pl.pallas_call(
        _implicit_mlp_kernel,
        out_shape=jax.ShapeDtypeStruct((B, F_pad, Mpad), jnp.float32),
        grid_spec=pltpu.PrefetchScalarGridSpec(
            num_scalar_prefetch=0,
            grid=(B, F_pad // tf),
            in_specs=in_specs,
            out_specs=pl.BlockSpec((1, tf, Mpad), lambda b, f: (b, f, 0)),
        ),
        compiler_params=pltpu.CompilerParams(
            dimension_semantics=("parallel", "parallel")),
    )(ppre, freq_col, wf, *flat_weights)

    return out[:, :F, :M]


# ----------------------- deterministic parameter setup -----------------------

def _xavier_uniform(key, out_f, in_f):
    bound = math.sqrt(6.0 / (in_f + out_f))
    return jax.random.uniform(key, (out_f, in_f), jnp.float32, -bound, bound)


def init_weights(key, len_groups, embed_dim, mlp_width, depth, num_masses):
    """Mirrors weights_init: xavier_uniform on Linear weights, zero biases."""
    P = sum(len_groups)
    keys = jax.random.split(key, len(len_groups) + depth + 1)

    # GroupwiseProjection: one Linear(1, embed_dim) per group (last group = frequency).
    wtok_rows = []
    for g, lg in enumerate(len_groups):
        wg = _xavier_uniform(keys[g], embed_dim, 1)                     # (E, 1)
        wtok_rows.append(jnp.tile(wg.reshape(1, embed_dim), (lg, 1)))   # (lg, E)
    wtok = jnp.concatenate(wtok_rows, axis=0).reshape(1, P * embed_dim)
    btok = jnp.zeros((1, P * embed_dim), jnp.float32)

    linears = []
    in_dim = P * embed_dim
    for d in range(depth):
        w = _xavier_uniform(keys[len(len_groups) + d], mlp_width, in_dim).T  # (in, out)
        linears.append((w, jnp.zeros((1, mlp_width), jnp.float32)))
        in_dim = mlp_width
    wo = _xavier_uniform(keys[-1], num_masses, mlp_width).T                  # (in, out)
    linears.append((wo, jnp.zeros((1, num_masses), jnp.float32)))

    return {"wtok": wtok, "btok": btok, "linears": linears}


# --------------------------- pure-JAX reference ------------------------------

def implicit_mlp_reference(frequency, parameters, weights, *, embed_dim):
    """Mirrors the torch forward literally (repeat_interleave + groupwise proj + MLP)."""
    B, F = frequency.shape
    params_cat = jnp.concatenate(parameters, axis=1)
    params_rep = jnp.repeat(params_cat, F, axis=0)
    feats = jnp.concatenate([params_rep, frequency.reshape(-1, 1)], axis=1)
    x_rep = jnp.repeat(feats, embed_dim, axis=1).astype(jnp.float32)
    h = x_rep * weights["wtok"] + weights["btok"]
    linears = weights["linears"]
    for i, (w, b) in enumerate(linears):
        h = h @ w + b
        if i < len(linears) - 2:
            h = jnp.maximum(h, 0.0)
    M = linears[-1][0].shape[1]
    return h.reshape(B, F, M)


if __name__ == "__main__":
    key = jax.random.PRNGKey(0)
    B, F = 2, 8                      # batch, num_frequencies
    num_masses = 5                   # parameters_example[0].shape[1]
    len_other = 2                    # second parameter group width
    embed_dim, depth, mlp_width = 4, 2, 32

    k_freq, k_p0, k_p1, k_w = jax.random.split(key, 4)
    frequency = jax.random.uniform(k_freq, (B, F), jnp.float32)
    parameters = [
        jax.random.normal(k_p0, (B, num_masses), jnp.float32),
        jax.random.normal(k_p1, (B, len_other), jnp.float32),
    ]
    # len_groups = per-group token counts + [1] for the appended frequency column
    len_groups = [num_masses, len_other, 1]

    weights = init_weights(k_w, len_groups, embed_dim, mlp_width, depth, num_masses)

    out = implicit_mlp_pallas(frequency, parameters, weights, embed_dim=embed_dim)
    out = jax.block_until_ready(out)

    ref = implicit_mlp_reference(frequency, parameters, weights, embed_dim=embed_dim)
    assert out.shape == (B, F, num_masses), out.shape
    assert jnp.allclose(out, ref, rtol=1e-5, atol=1e-5), "mismatch vs pure-JAX reference"

    print("KERNEL_OK")
</pallas_src>

<mosaic_0001>
module attributes {stable_mosaic.version = 11 : i64} {
  func.func @_implicit_mlp_kernel(%arg0: i32, %arg1: i32, %arg2: memref<1x1x32xf32, #tpu.memory_space<vmem>>, %arg3: memref<1x8x1xf32, #tpu.memory_space<vmem>>, %arg4: memref<1x32xf32, #tpu.memory_space<vmem>>, %arg5: memref<32x32xf32, #tpu.memory_space<vmem>>, %arg6: memref<1x32xf32, #tpu.memory_space<vmem>>, %arg7: memref<32x128xf32, #tpu.memory_space<vmem>>, %arg8: memref<1x128xf32, #tpu.memory_space<vmem>>, %arg9: memref<1x8x128xf32, #tpu.memory_space<vmem>>) attributes {dimension_semantics = [#tpu.dimension_semantics<parallel>, #tpu.dimension_semantics<parallel>], iteration_bounds = array<i64: 2, 1>, scalar_prefetch = 0 : i64, scratch_operands = 0 : i64, tpu.core_type = #tpu.core_type<tc>, window_params = [{transform_indices = @transform_0, window_bounds = array<i64: 1, 1, 32>}, {transform_indices = @transform_1, window_bounds = array<i64: 1, 8, 1>}, {pipeline_mode = #tpu.pipeline_mode<synchronous>, transform_indices = @transform_2, window_bounds = array<i64: 1, 32>}, {pipeline_mode = #tpu.pipeline_mode<synchronous>, transform_indices = @transform_3, window_bounds = array<i64: 32, 32>}, {pipeline_mode = #tpu.pipeline_mode<synchronous>, transform_indices = @transform_4, window_bounds = array<i64: 1, 32>}, {pipeline_mode = #tpu.pipeline_mode<synchronous>, transform_indices = @transform_5, window_bounds = array<i64: 32, 128>}, {pipeline_mode = #tpu.pipeline_mode<synchronous>, transform_indices = @transform_6, window_bounds = array<i64: 1, 128>}, {transform_indices = @transform_7, window_bounds = array<i64: 1, 8, 128>}]} {
    %c0 = arith.constant 0 : index
    %c0_0 = arith.constant 0 : index
    %c0_1 = arith.constant 0 : index
    %0 = vector.load %arg3[%c0, %c0_0, %c0_1] : memref<1x8x1xf32, #tpu.memory_space<vmem>>, vector<1x8x1xf32>
    %1 = vector.shape_cast %0 : vector<1x8x1xf32> to vector<8x1xf32>
    %c0_2 = arith.constant 0 : index
    %c0_3 = arith.constant 0 : index
    %2 = vector.load %arg4[%c0_2, %c0_3] : memref<1x32xf32, #tpu.memory_space<vmem>>, vector<1x32xf32>
    %3 = vector.broadcast %1 : vector<8x1xf32> to vector<8x32xf32>
    %4 = vector.broadcast %2 : vector<1x32xf32> to vector<8x32xf32>
    %5 = arith.mulf %3, %4 : vector<8x32xf32>
    %c0_4 = arith.constant 0 : index
    %c0_5 = arith.constant 0 : index
    %c0_6 = arith.constant 0 : index
    %6 = vector.load %arg2[%c0_4, %c0_5, %c0_6] : memref<1x1x32xf32, #tpu.memory_space<vmem>>, vector<1x1x32xf32>
    %7 = vector.shape_cast %6 : vector<1x1x32xf32> to vector<1x32xf32>
    %8 = vector.broadcast %7 : vector<1x32xf32> to vector<8x32xf32>
    %9 = arith.addf %5, %8 : vector<8x32xf32>
    %cst = arith.constant 0.000000e+00 : f32
    %10 = vector.broadcast %cst : f32 to vector<8x32xf32>
    %11 = arith.maximumf %9, %10 : vector<8x32xf32>
    %c0_7 = arith.constant 0 : index
    %c0_8 = arith.constant 0 : index
    %12 = vector.load %arg5[%c0_7, %c0_8] : memref<32x32xf32, #tpu.memory_space<vmem>>, vector<32x32xf32>
    %c0_9 = arith.constant 0 : index
    %c0_10 = arith.constant 0 : index
    %13 = vector.load %arg6[%c0_9, %c0_10] : memref<1x32xf32, #tpu.memory_space<vmem>>, vector<1x32xf32>
    %cst_11 = arith.constant dense<0.000000e+00> : vector<8x32xf32>
    %14 = tpu.matmul %11, %12, %cst_11 {dimension_numbers = #tpu.dot_dimension_numbers<[1], [0], [0], [1], [0, 0, 1, 1], [], []>} : vector<8x32xf32>, vector<32x32xf32>, vector<8x32xf32> -> vector<8x32xf32>
    %15 = vector.broadcast %13 : vector<1x32xf32> to vector<8x32xf32>
    %16 = arith.addf %14, %15 : vector<8x32xf32>
    %c0_12 = arith.constant 0 : index
    %c0_13 = arith.constant 0 : index
    %17 = vector.load %arg7[%c0_12, %c0_13] : memref<32x128xf32, #tpu.memory_space<vmem>>, vector<32x128xf32>
    %c0_14 = arith.constant 0 : index
    %c0_15 = arith.constant 0 : index
    %18 = vector.load %arg8[%c0_14, %c0_15] : memref<1x128xf32, #tpu.memory_space<vmem>>, vector<1x128xf32>
    %cst_16 = arith.constant dense<0.000000e+00> : vector<8x128xf32>
    %19 = tpu.matmul %16, %17, %cst_16 {dimension_numbers = #tpu.dot_dimension_numbers<[1], [0], [0], [1], [0, 0, 1, 1], [], []>} : vector<8x32xf32>, vector<32x128xf32>, vector<8x128xf32> -> vector<8x128xf32>
    %20 = vector.broadcast %18 : vector<1x128xf32> to vector<8x128xf32>
    %21 = arith.addf %19, %20 : vector<8x128xf32>
    %c0_17 = arith.constant 0 : index
    %c0_18 = arith.constant 0 : index
    %c0_19 = arith.constant 0 : index
    %22 = vector.load %arg9[%c0_17, %c0_18, %c0_19] : memref<1x8x128xf32, #tpu.memory_space<vmem>>, vector<1x8x128xf32>
    %23 = vector.shape_cast %22 : vector<1x8x128xf32> to vector<8x128xf32>
    %24 = vector.shape_cast %21 : vector<8x128xf32> to vector<1x8x128xf32>
    tpu.vector_store %arg9[%c0_17, %c0_18, %c0_19], %24 {strides = array<i32>} : memref<1x8x128xf32, #tpu.memory_space<vmem>>, vector<1x8x128xf32>,
    return
  }
  func.func @transform_0(%arg0: i32, %arg1: i32) -> (i32, i32, i32) {
    %c0_i32 = arith.constant 0 : i32
    %c0_i32_0 = arith.constant 0 : i32
    %c0_i32_1 = arith.constant 0 : i32
    return %arg0, %c0_i32, %c0_i32_0 : i32, i32, i32
  }
  func.func @transform_1(%arg0: i32, %arg1: i32) -> (i32, i32, i32) {
    %c0_i32 = arith.constant 0 : i32
    %c0_i32_0 = arith.constant 0 : i32
    return %arg0, %arg1, %c0_i32 : i32, i32, i32
  }
  func.func @transform_2(%arg0: i32, %arg1: i32) -> (i32, i32) {
    %c0_i32 = arith.constant 0 : i32
    %c0_i32_0 = arith.constant 0 : i32
    %c0_i32_1 = arith.constant 0 : i32
    return %c0_i32, %c0_i32_0 : i32, i32
  }
  func.func @transform_3(%arg0: i32, %arg1: i32) -> (i32, i32) {
    %c0_i32 = arith.constant 0 : i32
    %c0_i32_0 = arith.constant 0 : i32
    %c0_i32_1 = arith.constant 0 : i32
    return %c0_i32, %c0_i32_0 : i32, i32
  }
  func.func @transform_4(%arg0: i32, %arg1: i32) -> (i32, i32) {
    %c0_i32 = arith.constant 0 : i32
    %c0_i32_0 = arith.constant 0 : i32
    %c0_i32_1 = arith.constant 0 : i32
    return %c0_i32, %c0_i32_0 : i32, i32
  }
  func.func @transform_5(%arg0: i32, %arg1: i32) -> (i32, i32) {
    %c0_i32 = arith.constant 0 : i32
    %c0_i32_0 = arith.constant 0 : i32
    %c0_i32_1 = arith.constant 0 : i32
    return %c0_i32, %c0_i32_0 : i32, i32
  }
  func.func @transform_6(%arg0: i32, %arg1: i32) -> (i32, i32) {
    %c0_i32 = arith.constant 0 : i32
    %c0_i32_0 = arith.constant 0 : i32
    %c0_i32_1 = arith.constant 0 : i32
    return %c0_i32, %c0_i32_0 : i32, i32
  }
  func.func @transform_7(%arg0: i32, %arg1: i32) -> (i32, i32, i32) {
    %c0_i32 = arith.constant 0 : i32
    %c0_i32_0 = arith.constant 0 : i32
    return %arg0, %arg1, %c0_i32 : i32, i32, i32
  }
}

</mosaic_0001>

<llo_original>
// kernel: tpu_custom_call.1
$region0: #{tpu_custom_call.1}
  #allocation0 [shape = 'u32[]', space=smem, size = 0x4, offset = 0x4, fixed_abs, tag = 'smem constant byte address 0x4 - core index']
  #allocation1 [shape = 'u32[144,128]{1,0:T(1,128)}', space=vmem, size = 0x12000, scoped, tag = 'internal scratch']
  %s0 = inlined_call_operand.vmem [shape: f32[2,1,32], index: 0, kind: input, shape index: {}]
  %s1 = inlined_call_operand.vmem [shape: f32[2,8,1], index: 1, kind: input, shape index: {}]
  %s2 = inlined_call_operand.vmem [shape: f32[1,32], index: 2, kind: input, shape index: {}]
  %s3 = inlined_call_operand.hbm [shape: f32[32,32], index: 3, kind: input, shape index: {}]
  %s4 = inlined_call_operand.vmem [shape: f32[1,32], index: 4, kind: input, shape index: {}]
  %s5 = inlined_call_operand.vmem [shape: f32[32,128], index: 5, kind: input, shape index: {}]
  %s6 = inlined_call_operand.vmem [shape: f32[1,128], index: 6, kind: input, shape index: {}]
  %s7 = inlined_call_operand.hbm [shape: f32[2,8,128], index: 7, kind: output, shape index: {}]
  %s8 = sld [smem:[#allocation0]]
  $region65: #{tpu_custom_call.1} parent=0
    _
  %s10 = ssub.s32 1, %s8
  %s11 = scalar_select 0, %s10, %s8
  $region1: #{tpu_custom_call.1} parent=0
    #allocation2 [shape = 'u8[16384]{0}', space=vmem, size = 0x4000, scoped, tag = 'input window, operand 3, single buffered']
    #allocation3 [shape = 's32[2]{0}', space=sflag, size = 0x8, scoped, tag = 'scoped memory for tpu_custom_call.1']
    #allocation4 [shape = 's32[2]{0}', space=sflag, size = 0x8, scoped, tag = 'scoped memory for tpu_custom_call.1']
    #allocation5 [shape = 'u8[8192]{0}', space=vmem, size = 0x2000, scoped, tag = 'output window, operand 0']
    %12 = vsyncpa [#allocation3], 0
    %13 = vsyncpa [#allocation4], 0
    %s14 = scalar_lea.sflag [#allocation4], 1
    %15 = vsyncpa %s14, 0
    loop: start=0, step=1, limit=4
    $region2: #{tpu_custom_call.1} parent=1 // loop_pre_header
      _
    $region3: #{tpu_custom_call.1} parent=1 // loop_header
      %s17 = sphi 0, %s21
      %p18 = scmp.ge.s32.totalorder %s17, 4
      %s24 = sphi 0, %s36
      %s25 = sphi 0, %s32
      %s26 = sphi 0, %s24
      %s27 = sphi 0, %s25
      %s28 = sphi 0, %s26
      %s29 = sphi 0, %s27
      %s39 = sphi 0, %s41
      %s42 = sphi 0, %s39
      %s43 = sphi 0, %s42
      %s59 = sphi 0, %s43
      %s67 = sphi 0, %s69
      %s70 = sphi 0, %s67
      %s71 = sphi 0, %s70
      %s87 = sphi 0, %s71
      %s91 = sphi 0, %s91
      %s93 = sphi 0, %s91
      %s94 = sphi 0, %s93
      %s108 = sphi 0, %s94
      %s112 = sphi 0, %s112
      %s114 = sphi 0, %s112
      %s115 = sphi 0, %s114
      %s129 = sphi 0, %s115
      %s133 = sphi 0, %s133
      %s135 = sphi 0, %s133
      %s136 = sphi 0, %s135
      %s150 = sphi 0, %s136
      %s154 = sphi 0, %s154
      %s156 = sphi 0, %s154
      %s157 = sphi 0, %s156
      %s171 = sphi 0, %s157
      %s175 = sphi 0, %s175
      %s177 = sphi 0, %s175
      %s178 = sphi 0, %s177
      %s192 = sphi 0, %s178
      %s200 = sphi 0, %s202
      %s203 = sphi 0, %s200
      %s204 = sphi 0, %s203
      %s220 = sphi 0, %s204
    $region4: #{tpu_custom_call.1} parent=1 // loop_header_branch
      %20 = sbr.rel (%p18) target = $region8
    $region5: #{tpu_custom_call.1} parent=1 // loop_body
      %s22 = ssub.s32 %s17, 1
      %s23 = ssub.s32 %s17, 2
      %s30 = sadd.s32 1, %s25
      %p31 = scmp.ge.s32.totalorder %s30, 1
      %s32 = scalar_select %p31, 0, %s30
      %s33 = sadd.s32 1, %s24
      %s34 = scalar_select %p31, %s33, %s24
      %p35 = scmp.ge.s32.totalorder %s34, 2
      %s36 = scalar_select %p35, 0, %s34
      %s37 = ssub.s32 %s24, %s36
      %p38 = scmp.eq.s32.totalorder %s37, 0
      %s40 = sadd.s32 %s39, 1
      %s41 = scalar_select %p38, %s39, %s40
      %p44 = pneg %p38
      %p45 = scmp.eq.s32.totalorder %s17, 1
      %p46 = por %p44, %p45
      %p47 = scmp.ne.s32.totalorder %s39, %s42
      %p48 = scmp.eq.s32.totalorder %s17, 0
      %p49 = por %p47, %p48
      %p50 = scmp.ne.s32.totalorder %s39, %s42
      %p51 = scmp.eq.s32.totalorder %s22, 1
      %p52 = por %p50, %p51
      %p53 = scmp.ne.s32.totalorder %s42, %s43
      %p54 = scmp.eq.s32.totalorder %s22, 0
      %p55 = por %p53, %p54
      %p56 = scmp.ne.s32.totalorder %s42, %s43
      %p57 = scmp.eq.s32.totalorder %s23, 1
      %p58 = por %p56, %p57
      %p60 = scmp.ne.s32.totalorder %s43, %s59
      %p61 = scmp.eq.s32.totalorder %s23, 0
      %p62 = por %p60, %p61
      %s63 = ssub.s32 %s24, %s36
      %s64 = ssub.s32 %s25, %s32
      %s65 = sor.u32 %s63, %s64
      %p66 = scmp.eq.s32.totalorder %s65, 0
      %s68 = sadd.s32 %s67, 1
      %s69 = scalar_select %p66, %s67, %s68
      %p72 = pneg %p66
      %p73 = scmp.eq.s32.totalorder %s17, 1
      %p74 = por %p72, %p73
      %p75 = scmp.ne.s32.totalorder %s67, %s70
      %p76 = scmp.eq.s32.totalorder %s17, 0
      %p77 = por %p75, %p76
      %p78 = scmp.ne.s32.totalorder %s67, %s70
      %p79 = scmp.eq.s32.totalorder %s22, 1
      %p80 = por %p78, %p79
      %p81 = scmp.ne.s32.totalorder %s70, %s71
      %p82 = scmp.eq.s32.totalorder %s22, 0
      %p83 = por %p81, %p82
      %p84 = scmp.ne.s32.totalorder %s70, %s71
      %p85 = scmp.eq.s32.totalorder %s23, 1
      %p86 = por %p84, %p85
      %p88 = scmp.ne.s32.totalorder %s71, %s87
      %p89 = scmp.eq.s32.totalorder %s23, 0
      %p90 = por %p88, %p89
      %s92 = sadd.s32 %s91, 1
      %p95 = scmp.eq.s32.totalorder %s17, 1
      %p96 = scmp.ne.s32.totalorder %s91, %s93
      %p97 = scmp.eq.s32.totalorder %s17, 0
      %p98 = por %p96, %p97
      %p99 = scmp.ne.s32.totalorder %s91, %s93
      %p100 = scmp.eq.s32.totalorder %s22, 1
      %p101 = por %p99, %p100
      %p102 = scmp.ne.s32.totalorder %s93, %s94
      %p103 = scmp.eq.s32.totalorder %s22, 0
      %p104 = por %p102, %p103
      %p105 = scmp.ne.s32.totalorder %s93, %s94
      %p106 = scmp.eq.s32.totalorder %s23, 1
      %p107 = por %p105, %p106
      %p109 = scmp.ne.s32.totalorder %s94, %s108
      %p110 = scmp.eq.s32.totalorder %s23, 0
      %p111 = por %p109, %p110
      %s113 = sadd.s32 %s112, 1
      %p116 = scmp.eq.s32.totalorder %s17, 1
      %p117 = scmp.ne.s32.totalorder %s112, %s114
      %p118 = scmp.eq.s32.totalorder %s17, 0
      %p119 = por %p117, %p118
      %p120 = scmp.ne.s32.totalorder %s112, %s114
      %p121 = scmp.eq.s32.totalorder %s22, 1
      %p122 = por %p120, %p121
      %p123 = scmp.ne.s32.totalorder %s114, %s115
      %p124 = scmp.eq.s32.totalorder %s22, 0
      %p125 = por %p123, %p124
      %p126 = scmp.ne.s32.totalorder %s114, %s115
      %p127 = scmp.eq.s32.totalorder %s23, 1
      %p128 = por %p126, %p127
      %p130 = scmp.ne.s32.totalorder %s115, %s129
      %p131 = scmp.eq.s32.totalorder %s23, 0
      %p132 = por %p130, %p131
      %s134 = sadd.s32 %s133, 1
      %p137 = scmp.eq.s32.totalorder %s17, 1
      %p138 = scmp.ne.s32.totalorder %s133, %s135
      %p139 = scmp.eq.s32.totalorder %s17, 0
      %p140 = por %p138, %p139
      %p141 = scmp.ne.s32.totalorder %s133, %s135
      %p142 = scmp.eq.s32.totalorder %s22, 1
      %p143 = por %p141, %p142
      %p144 = scmp.ne.s32.totalorder %s135, %s136
      %p145 = scmp.eq.s32.totalorder %s22, 0
      %p146 = por %p144, %p145
      %p147 = scmp.ne.s32.totalorder %s135, %s136
      %p148 = scmp.eq.s32.totalorder %s23, 1
      %p149 = por %p147, %p148
      %p151 = scmp.ne.s32.totalorder %s136, %s150
      %p152 = scmp.eq.s32.totalorder %s23, 0
      %p153 = por %p151, %p152
      %s155 = sadd.s32 %s154, 1
      %p158 = scmp.eq.s32.totalorder %s17, 1
      %p159 = scmp.ne.s32.totalorder %s154, %s156
      %p160 = scmp.eq.s32.totalorder %s17, 0
      %p161 = por %p159, %p160
      %p162 = scmp.ne.s32.totalorder %s154, %s156
      %p163 = scmp.eq.s32.totalorder %s22, 1
      %p164 = por %p162, %p163
      %p165 = scmp.ne.s32.totalorder %s156, %s157
      %p166 = scmp.eq.s32.totalorder %s22, 0
      %p167 = por %p165, %p166
      %p168 = scmp.ne.s32.totalorder %s156, %s157
      %p169 = scmp.eq.s32.totalorder %s23, 1
      %p170 = por %p168, %p169
      %p172 = scmp.ne.s32.totalorder %s157, %s171
      %p173 = scmp.eq.s32.totalorder %s23, 0
      %p174 = por %p172, %p173
      %s176 = sadd.s32 %s175, 1
      %p179 = scmp.eq.s32.totalorder %s17, 1
      %p180 = scmp.ne.s32.totalorder %s175, %s177
      %p181 = scmp.eq.s32.totalorder %s17, 0
      %p182 = por %p180, %p181
      %p183 = scmp.ne.s32.totalorder %s175, %s177
      %p184 = scmp.eq.s32.totalorder %s22, 1
      %p185 = por %p183, %p184
      %p186 = scmp.ne.s32.totalorder %s177, %s178
      %p187 = scmp.eq.s32.totalorder %s22, 0
      %p188 = por %p186, %p187
      %p189 = scmp.ne.s32.totalorder %s177, %s178
      %p190 = scmp.eq.s32.totalorder %s23, 1
      %p191 = por %p189, %p190
      %p193 = scmp.ne.s32.totalorder %s178, %s192
      %p194 = scmp.eq.s32.totalorder %s23, 0
      %p195 = por %p193, %p194
      %s196 = ssub.s32 %s24, %s36
      %s197 = ssub.s32 %s25, %s32
      %s198 = sor.u32 %s196, %s197
      %p199 = scmp.eq.s32.totalorder %s198, 0
      %s201 = sadd.s32 %s200, 1
      %s202 = scalar_select %p199, %s200, %s201
      %p205 = pneg %p199
      %p206 = scmp.eq.s32.totalorder %s17, 1
      %p207 = por %p205, %p206
      %p208 = scmp.ne.s32.totalorder %s200, %s203
      %p209 = scmp.eq.s32.totalorder %s17, 0
      %p210 = por %p208, %p209
      %p211 = scmp.ne.s32.totalorder %s200, %s203
      %p212 = scmp.eq.s32.totalorder %s22, 1
      %p213 = por %p211, %p212
      %p214 = scmp.ne.s32.totalorder %s203, %s204
      %p215 = scmp.eq.s32.totalorder %s22, 0
      %p216 = por %p214, %p215
      %p217 = scmp.ne.s32.totalorder %s203, %s204
      %p218 = scmp.eq.s32.totalorder %s23, 1
      %p219 = por %p217, %p218
      %p221 = scmp.ne.s32.totalorder %s204, %s220
      %p222 = scmp.eq.s32.totalorder %s23, 0
      %p223 = por %p221, %p222
      %p224 = scmp.le.s32.totalorder 1, %s17
      %p225 = scmp.lt.s32.totalorder %s17, 3
      %p226 = pnand %p224, %p225
      %p227 = pneg %p226
      // Predicated region
      $region9: #{tpu_custom_call.1} parent=5 // pred_check
        _
      $region10: #{tpu_custom_call.1} parent=5 // pred_check_branch
        %229 = sbr.rel (%p226) target = $region12
      $region11: #{tpu_custom_call.1} parent=5 // pred_region
        %s230 = ssub.s32 %s17, 1
        // Predicated region
        $region13: #{tpu_custom_call.1} parent=11 // pred_check
          %p231 = pneg %p104
        $region14: #{tpu_custom_call.1} parent=11 // pred_check_branch
          %233 = sbr.rel (%p231) target = $region16
        $region15: #{tpu_custom_call.1} parent=11 // pred_region
          _
        $region16: #{tpu_custom_call.1} parent=11 // pred_fallthru
          _
        // Predicated region
        $region17: #{tpu_custom_call.1} parent=11 // pred_check
          %p234 = pneg %p125
        $region18: #{tpu_custom_call.1} parent=11 // pred_check_branch
          %236 = sbr.rel (%p234) target = $region20
        $region19: #{tpu_custom_call.1} parent=11 // pred_region
          %s238 = ssub.s32 512, 512
          %239 = vsyncadd [#allocation3], %s238
          %s240 = sshll.u32 [#allocation2], 4
          %s241 = int_to_ptr.vmem [resolvable:$true] %s240
          %246 = dma.hbm_to_vmem [thread:$0]  %s3, 512, %s241, [#allocation3], 128, 128, 8
        $region20: #{tpu_custom_call.1} parent=11 // pred_fallthru
          _
        // Predicated region
        $region21: #{tpu_custom_call.1} parent=11 // pred_check
          %p247 = pneg %p146
        $region22: #{tpu_custom_call.1} parent=11 // pred_check_branch
          %249 = sbr.rel (%p247) target = $region24
        $region23: #{tpu_custom_call.1} parent=11 // pred_region
          _
        $region24: #{tpu_custom_call.1} parent=11 // pred_fallthru
          _
        // Predicated region
        $region25: #{tpu_custom_call.1} parent=11 // pred_check
          %p250 = pneg %p167
        $region26: #{tpu_custom_call.1} parent=11 // pred_check_branch
          %252 = sbr.rel (%p250) target = $region28
        $region27: #{tpu_custom_call.1} parent=11 // pred_region
          _
        $region28: #{tpu_custom_call.1} parent=11 // pred_fallthru
          _
        // Predicated region
        $region29: #{tpu_custom_call.1} parent=11 // pred_check
          %p253 = pneg %p188
        $region30: #{tpu_custom_call.1} parent=11 // pred_check_branch
          %255 = sbr.rel (%p253) target = $region32
        $region31: #{tpu_custom_call.1} parent=11 // pred_region
          _
        $region32: #{tpu_custom_call.1} parent=11 // pred_fallthru
          _
      $region12: #{tpu_custom_call.1} parent=5 // pred_fallthru
        _
      %p256 = scmp.lt.s32.totalorder %s17, 2
      // Predicated region
      $region33: #{tpu_custom_call.1} parent=5 // pred_check
        %p257 = pneg %p256
      $region34: #{tpu_custom_call.1} parent=5 // pred_check_branch
        %259 = sbr.rel (%p257) target = $region36
      $region35: #{tpu_custom_call.1} parent=5 // pred_region
        // Predicated region
        $region37: #{tpu_custom_call.1} parent=35 // pred_check
          %p260 = pneg %p49
        $region38: #{tpu_custom_call.1} parent=35 // pred_check_branch
          %262 = sbr.rel (%p260) target = $region40
        $region39: #{tpu_custom_call.1} parent=35 // pred_region
          %p263 = scmp.lt.s32.totalorder %s24, 1
          %s264 = scalar_select %p263, %s24, 1
          %s265 = scalar_lea.vmem %s0, %s264
        $region40: #{tpu_custom_call.1} parent=35 // pred_fallthru
          _
        // Predicated region
        $region41: #{tpu_custom_call.1} parent=35 // pred_check
          %p266 = pneg %p77
        $region42: #{tpu_custom_call.1} parent=35 // pred_check_branch
          %268 = sbr.rel (%p266) target = $region44
        $region43: #{tpu_custom_call.1} parent=35 // pred_region
          %p269 = scmp.lt.s32.totalorder %s24, 1
          %s270 = scalar_select %p269, %s24, 1
          %p271 = scmp.lt.s32.totalorder %s25, 0
          %s272 = scalar_select %p271, %s25, 0
          %s273 = sadd.s32 %s272, %s270
          %s274 = smul.addr %s273, 8
          %s275 = scalar_lea.vmem %s1, %s274
        $region44: #{tpu_custom_call.1} parent=35 // pred_fallthru
          _
      $region36: #{tpu_custom_call.1} parent=5 // pred_fallthru
        _
      %p276 = scmp.le.s32.totalorder 1, %s17
      %p277 = scmp.lt.s32.totalorder %s17, 3
      %p278 = pnand %p276, %p277
      %p279 = pneg %p278
      // Predicated region
      $region45: #{tpu_custom_call.1} parent=5 // pred_check
        _
      $region46: #{tpu_custom_call.1} parent=5 // pred_check_branch
        %281 = sbr.rel (%p278) target = $region48
      $region47: #{tpu_custom_call.1} parent=5 // pred_region
        %s282 = ssub.s32 %s17, 1
        // Predicated region
        $region49: #{tpu_custom_call.1} parent=47 // pred_check
          %p283 = pneg %p125
        $region50: #{tpu_custom_call.1} parent=47 // pred_check_branch
          %285 = sbr.rel (%p283) target = $region52
        $region51: #{tpu_custom_call.1} parent=47 // pred_region
          %286 = dma.done [#allocation3], 512
        $region52: #{tpu_custom_call.1} parent=47 // pred_fallthru
          _
        %p287 = scmp.lt.s32.totalorder %s26, 1
        %s288 = scalar_select %p287, %s26, 1
        %s289 = scalar_lea.vmem %s0, %s288
        %p290 = pneg %p55
        %p291 = pneg %p52
        %p292 = scmp.lt.s32.totalorder %s26, 1
        %s293 = scalar_select %p292, %s26, 1
        %p294 = scmp.lt.s32.totalorder %s27, 0
        %s295 = scalar_select %p294, %s27, 0
        %s296 = sadd.s32 %s295, %s293
        %s297 = smul.addr %s296, 8
        %s298 = scalar_lea.vmem %s1, %s297
        %p299 = pneg %p83
        %p300 = pneg %p80
        %p301 = pneg %p104
        %p302 = pneg %p101
        %p303 = pneg %p125
        %p304 = pneg %p122
        %p305 = pneg %p146
        %p306 = pneg %p143
        %p307 = pneg %p167
        %p308 = pneg %p164
        %p309 = pneg %p188
        %p310 = pneg %p185
        %p311 = pneg %p216
        %p312 = pneg %p213
        %s313 = sand.u32 %s203, 1
        %s314 = scalar_lea.sflag [#allocation4], %s313
        %s315 = sand.u32 %s203, 1
        %s316 = smul.addr %s315, 8
        %s317 = scalar_lea.vmem [#allocation5], %s316
        %p318 = scmp.lt.s32.totalorder %s26, 1
        %s319 = scalar_select %p318, %s26, 1
        %s320 = scalar_lea.vmem %s0, %s319
        %p321 = scmp.lt.s32.totalorder %s26, 1
        %s322 = scalar_select %p321, %s26, 1
        %p323 = scmp.lt.s32.totalorder %s27, 0
        %s324 = scalar_select %p323, %s27, 0
        %s325 = sadd.s32 %s324, %s322
        %s326 = smul.addr %s325, 8
        %s327 = scalar_lea.vmem %s1, %s326
        %v328 = vld [vmem:[%s327] sm:$0xff]
        %v329 = vld [vmem:[%s2] sm:$0x1]
        %331 = vset.pattern.permute.xlu0 0
        %332 = vperm.xlu0 %331, %v328
        %v333 = vpop.permute.xlu0 %332
        %v336 = vlaneseq
        %v337 = vshrl.u32 %v336, 7
        %v338 = vsub.s32 0, %v337
        %v339 = vrot.slane %v329, %v338
        %v341 = vmul.f32 %v333, %v339
        %v342 = vld [vmem:[%s320] sm:$0x1]
        %v344 = vlaneseq
        %v345 = vshrl.u32 %v344, 7
        %v346 = vsub.s32 0, %v345
        %v347 = vrot.slane %v342, %v346
        %v349 = vadd.f32 %v341, %v347
        %v350 = vmax.f32 %v349, 0.0
        %v351 = vld [vmem:[#allocation2] sm:$0xff]
        %v352 = vld [vmem:[#allocation2 + $0x8] sm:$0xff]
        %v353 = vld [vmem:[#allocation2 + $0x10] sm:$0xff]
        %v354 = vld [vmem:[#allocation2 + $0x18] sm:$0xff]
        %v355 = vld [vmem:[%s4] sm:$0x1]
        %v357 = vlaneseq
        %v358 = vshrl.u32 %v357, 7
        %v359 = vsub.s32 0, %v358
        %v360 = vrot.slane %v355, %v359
        %vm362 = vcmask 261120
        %v364 = vsel %vm362, %v350, 0
        %366 = vmatprep.subr.mxu0 0.0
        %367 = vmatpush1.msra.mxu0 %v351
        %368 = vmatprep.subr.mxu0 0.0
        %369 = vmatpush1.msra.mxu0 %v352
        %370 = vmatprep.subr.mxu0 0.0
        %371 = vmatpush1.msra.mxu0 %v353
        %372 = vmatprep.subr.mxu0 0.0
        %373 = vmatpush1.msra.mxu0 %v354
        %374 = vmatprep.subr.mxu0 0.0
        %375 = vmatpush1.msra.mxu0 0.0
        %376 = vmatprep.subr.mxu0 0.0
        %377 = vmatpush1.msra.mxu0 0.0
        %378 = vmatprep.subr.mxu0 0.0
        %379 = vmatpush1.msra.mxu0 0.0
        %380 = vmatprep.subr.mxu0 0.0
        %381 = vmatpush1.msra.mxu0 0.0
        %382 = vmatprep.subr.mxu0 0.0
        %383 = vmatpush1.msra.mxu0 0.0
        %384 = vmatprep.subr.mxu0 0.0
        %385 = vmatpush1.msra.mxu0 0.0
        %386 = vmatprep.subr.mxu0 0.0
        %387 = vmatpush1.msra.mxu0 0.0
        %388 = vmatprep.subr.mxu0 0.0
        %389 = vmatpush1.msra.mxu0 0.0
        %390 = vmatprep.subr.mxu0 0.0
        %391 = vmatpush1.msra.mxu0 0.0
        %392 = vmatprep.subr.mxu0 0.0
        %393 = vmatpush1.msra.mxu0 0.0
        %394 = vmatprep.subr.mxu0 0.0
        %395 = vmatpush1.msra.mxu0 0.0
        %396 = vmatprep.subr.mxu0 0.0
        %397 = vmatpush1.msra.mxu0 0.0
        %398 = vmatprep.subr.mxu0 0.0
        %399 = vmatpush1.msra.mxu0 0.0
        %400 = vmatprep.subr.mxu0 0.0
        %401 = vmatpush1.msra.mxu0 0.0
        %402 = vmatprep.subr.mxu0 0.0
        %403 = vmatpush1.msra.mxu0 0.0
        %404 = vmatprep.subr.mxu0 0.0
        %405 = vmatpush1.msra.mxu0 0.0
        %406 = vmatprep.subr.mxu0 0.0
        %407 = vmatpush1.msra.mxu0 0.0
        %408 = vmatprep.subr.mxu0 0.0
        %409 = vmatpush1.msra.mxu0 0.0
        %410 = vmatprep.subr.mxu0 0.0
        %411 = vmatpush1.msra.mxu0 0.0
        %412 = vmatprep.subr.mxu0 0.0
        %413 = vmatpush1.msra.mxu0 0.0
        %414 = vmatprep.subr.mxu0 0.0
        %415 = vmatpush1.msra.mxu0 0.0
        %416 = vmatprep.subr.mxu0 0.0
        %417 = vmatpush1.msra.mxu0 0.0
        %418 = vmatprep.subr.mxu0 0.0
        %419 = vmatpush1.msra.mxu0 0.0
        %420 = vmatprep.subr.mxu0 0.0
        %421 = vmatpush1.msra.mxu0 0.0
        %422 = vmatprep.subr.mxu0 0.0
        %423 = vmatpush1.msra.mxu0 0.0
        %424 = vmatprep.subr.mxu0 0.0
        %425 = vmatpush1.msra.mxu0 0.0
        %426 = vmatprep.subr.mxu0 0.0
        %427 = vmatpush1.msra.mxu0 0.0
        %428 = vmatprep.subr.mxu0 0.0
        %429 = vmatpush1.msra.mxu0 0.0
        %430 = vmatprep.mubr.f32.mxu0 0.0
        %431 = vmatmul.mubr.f32.gmra.mrb[0].mxu0 %v364
        %v432 = vpop.f32.mrb[0].mxu0
        %v433 = vadd.f32 %v360, %v432
        %v434 = vpop.f32.mrb[0].mxu0
        %435 = vdwg.mxu0
        %v436 = vld [vmem:[%s5] sm:$0xff]
        %v437 = vld [vmem:[%s5 + $0x8] sm:$0xff]
        %v438 = vld [vmem:[%s5 + $0x10] sm:$0xff]
        %v439 = vld [vmem:[%s5 + $0x18] sm:$0xff]
        %v440 = vld [vmem:[%s6] sm:$0x1]
        %v442 = vlaneseq
        %v443 = vshrl.u32 %v442, 7
        %v444 = vsub.s32 0, %v443
        %v445 = vrot.slane %v440, %v444
        %v448 = vsel %vm362, %v433, 0
        %450 = vmatprep.subr.mxu0 0.0
        %451 = vmatpush1.msra.mxu0 %v436
        %452 = vmatprep.subr.mxu0 0.0
        %453 = vmatpush1.msra.mxu0 %v437
        %454 = vmatprep.subr.mxu0 0.0
        %455 = vmatpush1.msra.mxu0 %v438
        %456 = vmatprep.subr.mxu0 0.0
        %457 = vmatpush1.msra.mxu0 %v439
        %458 = vmatprep.subr.mxu0 0.0
        %459 = vmatpush1.msra.mxu0 0.0
        %460 = vmatprep.subr.mxu0 0.0
        %461 = vmatpush1.msra.mxu0 0.0
        %462 = vmatprep.subr.mxu0 0.0
        %463 = vmatpush1.msra.mxu0 0.0
        %464 = vmatprep.subr.mxu0 0.0
        %465 = vmatpush1.msra.mxu0 0.0
        %466 = vmatprep.subr.mxu0 0.0
        %467 = vmatpush1.msra.mxu0 0.0
        %468 = vmatprep.subr.mxu0 0.0
        %469 = vmatpush1.msra.mxu0 0.0
        %470 = vmatprep.subr.mxu0 0.0
        %471 = vmatpush1.msra.mxu0 0.0
        %472 = vmatprep.subr.mxu0 0.0
        %473 = vmatpush1.msra.mxu0 0.0
        %474 = vmatprep.subr.mxu0 0.0
        %475 = vmatpush1.msra.mxu0 0.0
        %476 = vmatprep.subr.mxu0 0.0
        %477 = vmatpush1.msra.mxu0 0.0
        %478 = vmatprep.subr.mxu0 0.0
        %479 = vmatpush1.msra.mxu0 0.0
        %480 = vmatprep.subr.mxu0 0.0
        %481 = vmatpush1.msra.mxu0 0.0
        %482 = vmatprep.subr.mxu0 0.0
        %483 = vmatpush1.msra.mxu0 0.0
        %484 = vmatprep.subr.mxu0 0.0
        %485 = vmatpush1.msra.mxu0 0.0
        %486 = vmatprep.subr.mxu0 0.0
        %487 = vmatpush1.msra.mxu0 0.0
        %488 = vmatprep.subr.mxu0 0.0
        %489 = vmatpush1.msra.mxu0 0.0
        %490 = vmatprep.subr.mxu0 0.0
        %491 = vmatpush1.msra.mxu0 0.0
        %492 = vmatprep.subr.mxu0 0.0
        %493 = vmatpush1.msra.mxu0 0.0
        %494 = vmatprep.subr.mxu0 0.0
        %495 = vmatpush1.msra.mxu0 0.0
        %496 = vmatprep.subr.mxu0 0.0
        %497 = vmatpush1.msra.mxu0 0.0
        %498 = vmatprep.subr.mxu0 0.0
        %499 = vmatpush1.msra.mxu0 0.0
        %500 = vmatprep.subr.mxu0 0.0
        %501 = vmatpush1.msra.mxu0 0.0
        %502 = vmatprep.subr.mxu0 0.0
        %503 = vmatpush1.msra.mxu0 0.0
        %504 = vmatprep.subr.mxu0 0.0
        %505 = vmatpush1.msra.mxu0 0.0
        %506 = vmatprep.subr.mxu0 0.0
        %507 = vmatpush1.msra.mxu0 0.0
        %508 = vmatprep.subr.mxu0 0.0
        %509 = vmatpush1.msra.mxu0 0.0
        %510 = vmatprep.subr.mxu0 0.0
        %511 = vmatpush1.msra.mxu0 0.0
        %512 = vmatprep.subr.mxu0 0.0
        %513 = vmatpush1.msra.mxu0 0.0
        %514 = vmatprep.mubr.f32.mxu0 0.0
        %515 = vmatmul.mubr.f32.gmra.mrb[0].mxu0 %v448
        %v516 = vpop.f32.mrb[0].mxu0
        %v517 = vadd.f32 %v445, %v516
        %v518 = vpop.f32.mrb[0].mxu0
        %519 = vdwg.mxu0
        %520 = vst [vmem:[%s317] sm:$0xff] %v517
        %s521 = sand.u32 %s203, 1
        %s522 = scalar_lea.sflag [#allocation4], %s521
        %s523 = sand.u32 %s203, 1
        %s524 = smul.addr %s523, 8
        %s525 = scalar_lea.vmem [#allocation5], %s524
        // Predicated region
        $region53: #{tpu_custom_call.1} parent=47 // pred_check
          %p526 = pneg %p213
        $region54: #{tpu_custom_call.1} parent=47 // pred_check_branch
          %528 = sbr.rel (%p526) target = $region56
        $region55: #{tpu_custom_call.1} parent=47 // pred_region
          %s530 = ssub.s32 128, 128
          %531 = vsyncadd %s522, %s530
          %s532 = sadd.s32 %s27, %s26
          %s533 = smul.addr %s532, 128
          %s534 = scalar_lea.hbm %s7, %s533
          %s536 = sshll.u32 %s525, 4
          %s537 = int_to_ptr.vmem [resolvable:$true] %s536
          %539 = dma.vmem_to_hbm [thread:$0]  %s537, 128, %s534, %s522
        $region56: #{tpu_custom_call.1} parent=47 // pred_fallthru
          _
      $region48: #{tpu_custom_call.1} parent=5 // pred_fallthru
        _
      %p540 = scmp.le.s32.totalorder 2, %s17
      // Predicated region
      $region57: #{tpu_custom_call.1} parent=5 // pred_check
        %p541 = pneg %p540
      $region58: #{tpu_custom_call.1} parent=5 // pred_check_branch
        %543 = sbr.rel (%p541) target = $region60
      $region59: #{tpu_custom_call.1} parent=5 // pred_region
        %s544 = ssub.s32 %s17, 2
        // Predicated region
        $region61: #{tpu_custom_call.1} parent=59 // pred_check
          %p545 = pneg %p219
        $region62: #{tpu_custom_call.1} parent=59 // pred_check_branch
          %547 = sbr.rel (%p545) target = $region64
        $region63: #{tpu_custom_call.1} parent=59 // pred_region
          %s548 = sand.u32 %s204, 1
          %s549 = scalar_lea.sflag [#allocation4], %s548
          %s550 = sand.u32 %s204, 1
          %s551 = smul.addr %s550, 8
          %s552 = scalar_lea.vmem [#allocation5], %s551
          %553 = dma.done %s549, 128
        $region64: #{tpu_custom_call.1} parent=59 // pred_fallthru
          _
      $region60: #{tpu_custom_call.1} parent=5 // pred_fallthru
        _
    $region6: #{tpu_custom_call.1} parent=1 // loop_footer
      %s21 = sadd.s32 1, %s17
    $region7: #{tpu_custom_call.1} parent=1 // loop_footer_branch
      %16 = sbr.rel target = $region3
    $region8: #{tpu_custom_call.1} parent=1 // loop_exit
      _
    %554 = vsyncpa [#allocation3], 1
    %s555 = scalar_lea.sflag [#allocation3], 1
    %556 = vsyncpa %s555, 1
    %557 = vsyncpa [#allocation4], 1
    %s558 = scalar_lea.sflag [#allocation4], 1
    %559 = vsyncpa %s558, 1

</llo_original>
